<compile_context>
chip_gen: v6e
topology: v6e:2x2x1
jax: 0.10.0
libtpu: 0.0.40
codegen_flags: <defaults>
</compile_context>

<pallas_src>
import functools
import math

import jax
import jax.numpy as jnp
from jax.experimental import pallas as pl
from jax.experimental.pallas import tpu as pltpu


# --------------------------------------------------------------------------- #
# Kernel body: out = where(cos*0 != 0, NaN, cos)   (elementwise, dtype-preserving)
# --------------------------------------------------------------------------- #
def _angle_loss_predict_kernel(x_ref, o_ref):
    x = x_ref[...]
    nonfinite = (x * 0.0) != 0.0                      # True only for NaN / +-Inf
    o_ref[...] = jnp.where(nonfinite, jnp.asarray(jnp.nan, dtype=x.dtype), x)


# --------------------------------------------------------------------------- #
# Tiling heuristics
# --------------------------------------------------------------------------- #
def _round_down(x, m):
    return (x // m) * m


def _round_up(x, m):
    return -(-x // m) * m


@functools.lru_cache(maxsize=None)
def _vmem_limit_bytes():
    """Scoped-VMEM limit for this kernel, derived from the chip's capacity."""
    try:
        cap = int(pltpu.get_tpu_info().vmem_capacity_bytes)
    except Exception:                                 # conservative fallback
        cap = 64 * 1024 * 1024
    # 3/4 of physical, capped at 64 MiB: -> 64 MiB on v5e/v6e, 48 MiB on v7x.
    return int(min(cap * 3 // 4, 64 * 1024 * 1024))


def _choose_tiles(rows, cols, itemsize, tile_bytes):
    """Pick (tile_rows, tile_cols, row_grid, col_grid) for a (rows, cols) array."""
    budget = max(tile_bytes // itemsize, 8 * 128)     # elements per block

    # Lane (column) tile: full width when >=8 rows still fit, else 128-multiple.
    if cols * 8 <= budget:
        tc = cols                                     # full extent (always legal)
    else:                                             # implies cols > 128
        tc = min(_round_down(budget // 8, 128), _round_down(cols, 128))
    cgrid = pl.cdiv(cols, tc)

    # Sublane (row) tile: largest multiple of 8 within budget, or full extent.
    tr = budget // tc
    if tr >= rows:
        tr = rows                                     # single block, full extent
    else:
        tr = max(8, _round_down(tr, 8))
        rgrid = pl.cdiv(rows, tr)
        if rgrid > 1:
            # Even, balanced row grid keeps both v7x TensorCores streaming;
            # on single-TC v5e/v6e this costs at most one extra grid step.
            rgrid = _round_up(rgrid, 2)
            tr = min(rows, max(8, _round_up(pl.cdiv(rows, rgrid), 8)))
    rgrid = pl.cdiv(rows, tr)
    return tr, tc, rgrid, cgrid


# --------------------------------------------------------------------------- #
# pallas_call over a 2-D view
# --------------------------------------------------------------------------- #
def _run_2d(x2d, donate):
    rows, cols = x2d.shape
    vmem_limit = _vmem_limit_bytes()
    # in + out, double-buffered = 4 resident blocks; /5 leaves ~20% headroom
    # for Mosaic internal scratch.
    tr, tc, rgrid, cgrid = _choose_tiles(rows, cols, x2d.dtype.itemsize,
                                         vmem_limit // 5)
    extra = {"input_output_aliases": {0: 0}} if donate else {}
    return pl.pallas_call(
        _angle_loss_predict_kernel,
        out_shape=jax.ShapeDtypeStruct((rows, cols), x2d.dtype),
        grid_spec=pl.GridSpec(
            grid=(rgrid, cgrid),
            in_specs=[pl.BlockSpec((tr, tc), lambda i, j: (i, j))],
            out_specs=pl.BlockSpec((tr, tc), lambda i, j: (i, j)),
        ),
        compiler_params=pltpu.CompilerParams(
            dimension_semantics=("parallel", "parallel"),
            vmem_limit_bytes=vmem_limit,
        ),
        **extra,
    )(x2d)


_FLAT_WIDTHS = (8192, 4096, 2048, 1024, 512, 256, 128)


def angle_loss_predict(cos_theta, phi_theta=None, target=None, *,
                       donate_input=False):
    """Pallas implementation of AngleLoss_predict.forward.

    phi_theta / target are accepted for interface parity with the PyTorch
    module but provably do not influence the returned tensor (see header).
    Set donate_input=True (with jit donation of cos_theta) to alias the
    output onto the input buffer.
    """
    del phi_theta, target
    x = cos_theta
    shape = x.shape

    if x.ndim == 0:
        return _run_2d(x.reshape(1, 1), donate_input).reshape(shape)
    if x.ndim == 1:
        return _run_2d(x.reshape(1, shape[0]), donate_input).reshape(shape)

    rows = math.prod(shape[:-1])
    cols = shape[-1]

    if cols % 128 != 0 and x.size % 128 == 0:
        # Free reshape into a lane-dense slab -> wide, unmasked vector stores.
        n = x.size
        width = next(w for w in _FLAT_WIDTHS if n % w == 0)
        return _run_2d(x.reshape(n // width, width), donate_input).reshape(shape)

    # Lane-aligned already, or the ragged lane edge is masked inside Pallas.
    return _run_2d(x.reshape(rows, cols), donate_input).reshape(shape)


if __name__ == "__main__":
    key = jax.random.PRNGKey(0)
    k_cos, k_phi, k_tgt = jax.random.split(key, 3)

    def reference(cos, phi):
        # Full PyTorch formula (it == 1), including phi_theta.
        lamb = max(5.0, 1500.0 / (1 + 0.1 * 1))
        mask = (cos * 0.0) != 0.0
        blend = cos - cos / (1.0 + lamb) + phi / (1.0 + lamb)
        return jnp.where(mask, blend, cos)

    # (batch, num_classes) with a lane-aligned class count -> fast 2-D path.
    B, C = 8, 128
    cos_theta = jax.random.normal(k_cos, (B, C), dtype=jnp.float32)
    phi_theta = jax.random.normal(k_phi, (B, C), dtype=jnp.float32)
    target = jax.random.randint(k_tgt, (B,), 0, C, dtype=jnp.int32)

    out = jax.block_until_ready(angle_loss_predict(cos_theta, phi_theta, target))
    assert out.shape == (B, C) and out.dtype == cos_theta.dtype
    assert jnp.allclose(out, reference(cos_theta, phi_theta), atol=1e-6)

    # Non-finite cos entries: the mask fires there; the PyTorch blend is NaN.
    cos_nf = cos_theta.at[0, 0].set(jnp.inf).at[1, 3].set(jnp.nan)
    out_nf = jax.block_until_ready(angle_loss_predict(cos_nf, phi_theta, target))
    assert jnp.allclose(out_nf, reference(cos_nf, phi_theta),
                        atol=1e-6, equal_nan=True)
    assert jnp.isnan(out_nf[0, 0]) and jnp.isnan(out_nf[1, 3])

    # Non-aligned class count, size not a multiple of 128 -> masked-edge path.
    cos_small = jax.random.normal(k_phi, (6, 10), dtype=jnp.float32)
    out_small = jax.block_until_ready(
        angle_loss_predict(cos_small, cos_small * 0.5, None))
    assert out_small.shape == (6, 10)
    assert jnp.allclose(out_small, cos_small, atol=1e-6)

    # Non-aligned last dim but 128-divisible size -> free lane-dense re-slab.
    cos_slab = jax.random.normal(k_cos, (16, 96), dtype=jnp.float32)
    out_slab = jax.block_until_ready(angle_loss_predict(cos_slab, None, None))
    assert out_slab.shape == (16, 96)
    assert jnp.allclose(out_slab, cos_slab, atol=1e-6)

    # 3-D input (leading dims collapsed) and 1-D input.
    cos_3d = jax.random.normal(k_tgt, (2, 4, 256), dtype=jnp.float32)
    out_3d = jax.block_until_ready(angle_loss_predict(cos_3d))
    assert out_3d.shape == (2, 4, 256) and jnp.allclose(out_3d, cos_3d)

    cos_1d = jax.random.normal(k_cos, (200,), dtype=jnp.float32)
    out_1d = jax.block_until_ready(angle_loss_predict(cos_1d))
    assert out_1d.shape == (200,) and jnp.allclose(out_1d, cos_1d)

    # Donated-input path: output aliases cos_theta's HBM buffer.
    donated = jnp.full((64, 256), 2.0, dtype=jnp.float32)
    donate_fn = jax.jit(lambda a: angle_loss_predict(a, donate_input=True),
                        donate_argnums=0)
    out_donated = jax.block_until_ready(donate_fn(donated))
    assert jnp.allclose(out_donated, 2.0)

    print("KERNEL_OK")
</pallas_src>

<mosaic_0001>
module attributes {stable_mosaic.version = 11 : i64} {
  func.func @_angle_loss_predict_kernel(%arg0: i32, %arg1: i32, %arg2: memref<8x128xf32, #tpu.memory_space<vmem>>, %arg3: memref<8x128xf32, #tpu.memory_space<vmem>>) attributes {dimension_semantics = [#tpu.dimension_semantics<parallel>, #tpu.dimension_semantics<parallel>], iteration_bounds = array<i64: 1, 1>, scalar_prefetch = 0 : i64, scratch_operands = 0 : i64, tpu.core_type = #tpu.core_type<tc>, window_params = [{transform_indices = @transform_0, window_bounds = array<i64: 8, 128>}, {transform_indices = @transform_1, window_bounds = array<i64: 8, 128>}]} {
    %c0 = arith.constant 0 : index
    %c0_0 = arith.constant 0 : index
    %0 = vector.load %arg2[%c0, %c0_0] : memref<8x128xf32, #tpu.memory_space<vmem>>, vector<8x128xf32>
    %cst = arith.constant 0.000000e+00 : f32
    %1 = vector.broadcast %cst : f32 to vector<8x128xf32>
    %2 = arith.mulf %0, %1 : vector<8x128xf32>
    %cst_1 = arith.constant 0.000000e+00 : f32
    %3 = vector.broadcast %cst_1 : f32 to vector<8x128xf32>
    %4 = arith.cmpf one, %2, %3 : vector<8x128xf32>
    %cst_2 = arith.constant 0x7FC00000 : f32
    %5 = vector.broadcast %cst_2 : f32 to vector<8x128xf32>
    %6 = arith.select %4, %5, %0 : vector<8x128xi1>, vector<8x128xf32>
    %c0_3 = arith.constant 0 : index
    %c0_4 = arith.constant 0 : index
    %7 = vector.load %arg3[%c0_3, %c0_4] : memref<8x128xf32, #tpu.memory_space<vmem>>, vector<8x128xf32>
    tpu.vector_store %arg3[%c0_3, %c0_4], %6 {strides = array<i32>} : memref<8x128xf32, #tpu.memory_space<vmem>>, vector<8x128xf32>,
    return
  }
  func.func @transform_0(%arg0: i32, %arg1: i32) -> (i32, i32) {
    %c0_i32 = arith.constant 0 : i32
    return %arg0, %arg1 : i32, i32
  }
  func.func @transform_1(%arg0: i32, %arg1: i32) -> (i32, i32) {
    %c0_i32 = arith.constant 0 : i32
    return %arg0, %arg1 : i32, i32
  }
}

</mosaic_0001>

<llo_original>
// kernel: tpu_custom_call.1
$region0: #{tpu_custom_call.1}
  #allocation0 [shape = 'u32[]', space=smem, size = 0x4, offset = 0x4, fixed_abs, tag = 'smem constant byte address 0x4 - core index']
  #allocation1 [shape = 'u32[144,128]{1,0:T(1,128)}', space=vmem, size = 0x12000, scoped, tag = 'internal scratch']
  %s0 = inlined_call_operand.hbm [shape: f32[8,128], index: 0, kind: input, shape index: {}]
  %s1 = inlined_call_operand.hbm [shape: f32[8,128], index: 1, kind: output, shape index: {}]
  %s2 = sld [smem:[#allocation0]]
  $region18: #{tpu_custom_call.1} parent=0
    _
  %s4 = ssub.s32 1, %s2
  %s5 = scalar_select 0, %s4, %s2
  $region1: #{tpu_custom_call.1} parent=0
    #allocation2 [shape = 'u8[4096]{0}', space=vmem, size = 0x1000, scoped, tag = 'input window, operand 0, single buffered']
    #allocation3 [shape = 's32[1]{0}', space=sflag, size = 0x4, scoped, tag = 'scoped memory for tpu_custom_call.1']
    #allocation4 [shape = 's32[1]{0}', space=sflag, size = 0x4, scoped, tag = 'scoped memory for tpu_custom_call.1']
    #allocation5 [shape = 'u8[4096]{0}', space=vmem, size = 0x1000, scoped, tag = 'output window, operand 0, single buffered']
    %6 = vsyncpa [#allocation3], 0
    %7 = vsyncpa [#allocation4], 0
    // Predicated region
    $region2: #{tpu_custom_call.1} parent=1 // pred_check
      _
    $region3: #{tpu_custom_call.1} parent=1 // pred_check_branch
      %9 = sbr.rel (0) target = $region5
    $region4: #{tpu_custom_call.1} parent=1 // pred_region
      %s11 = ssub.s32 128, 128
      %12 = vsyncadd [#allocation3], %s11
      %s14 = sshll.u32 [#allocation2], 4
      %s15 = int_to_ptr.vmem [resolvable:$true] %s14
      %17 = dma.hbm_to_vmem [thread:$0]  %s0, 128, %s15, [#allocation3]
    $region5: #{tpu_custom_call.1} parent=1 // pred_fallthru
      _
    // Predicated region
    $region6: #{tpu_custom_call.1} parent=1 // pred_check
      _
    $region7: #{tpu_custom_call.1} parent=1 // pred_check_branch
      %19 = sbr.rel (0) target = $region9
    $region8: #{tpu_custom_call.1} parent=1 // pred_region
      %20 = dma.done [#allocation3], 128
    $region9: #{tpu_custom_call.1} parent=1 // pred_fallthru
      _
    %v21 = vld [vmem:[#allocation2] sm:$0xff]
    %v22 = vmul.f32 %v21, 0.0
    %vm23 = vcmp.ne.f32.partialorder %v22, 0.0
    %v24 = vsel %vm23, nan, %v21
    %25 = vst [vmem:[#allocation5] sm:$0xff] %v24
    // Predicated region
    $region10: #{tpu_custom_call.1} parent=1 // pred_check
      _
    $region11: #{tpu_custom_call.1} parent=1 // pred_check_branch
      %27 = sbr.rel (0) target = $region13
    $region12: #{tpu_custom_call.1} parent=1 // pred_region
      %s29 = ssub.s32 128, 128
      %30 = vsyncadd [#allocation4], %s29
      %s32 = sshll.u32 [#allocation5], 4
      %s33 = int_to_ptr.vmem [resolvable:$true] %s32
      %35 = dma.vmem_to_hbm [thread:$0]  %s33, 128, %s1, [#allocation4]
    $region13: #{tpu_custom_call.1} parent=1 // pred_fallthru
      _
    // Predicated region
    $region14: #{tpu_custom_call.1} parent=1 // pred_check
      _
    $region15: #{tpu_custom_call.1} parent=1 // pred_check_branch
      %37 = sbr.rel (0) target = $region17
    $region16: #{tpu_custom_call.1} parent=1 // pred_region
      %38 = dma.done [#allocation4], 128
    $region17: #{tpu_custom_call.1} parent=1 // pred_fallthru
      _
    %39 = vsyncpa [#allocation3], 1
    %40 = vsyncpa [#allocation4], 1

</llo_original>
